<compile_context>
chip_gen: v5e
topology: v5e:2x2
jax: 0.10.0
libtpu: 0.0.40
codegen_flags: <defaults>
</compile_context>

<pallas_src>
import jax
import jax.numpy as jnp
from jax.experimental import pallas as pl
from jax.experimental.pallas import tpu as pltpu

IN_FEATURES = 50
HIDDEN = 50


def _end_critic_kernel(x_ref, w1_ref, b1_ref, w2_ref, b2_ref, o_ref):
    # fc1 on the MXU: (TM, 50) @ (50, 50); weights already in (in, out) layout.
    h = jnp.dot(x_ref[...], w1_ref[...], preferred_element_type=jnp.float32)
    h = jnp.maximum(h + b1_ref[...], 0.0)                    # bias + ReLU (VPU)
    # fc2 as VPU multiply + row (lane) reduction instead of an N=1 MXU matmul.
    out = jnp.sum(h * w2_ref[...], axis=-1, keepdims=True)   # (TM, 1)
    o_ref[...] = (out + b2_ref[0, 0]).astype(o_ref.dtype)    # b2 scalar from SMEM


def end_critic_forward(x, actions, params):
    """x: (B, 50) float32. `actions` is accepted but unused (matches PyTorch)."""
    del actions  # unused in the reference forward
    w1, b1, w2, b2 = params["w1"], params["b1"], params["w2"], params["b2"]
    B = x.shape[0]

    # Batch tile: large enough to hide DMA / reach HBM roofline, small enough
    # to fit v5e's 16 MiB scoped-VMEM default with double-buffering (512 rows
    # of f32 x 50 features ~= 100 KiB per buffer).
    TM = 512 if B >= 512 else max(8, ((B + 7) // 8) * 8)
    n_tiles = pl.cdiv(B, TM)
    B_pad = n_tiles * TM
    if B_pad != B:
        x = jnp.pad(x, ((0, B_pad - B), (0, 0)))

    out = pl.pallas_call(
        _end_critic_kernel,
        out_shape=jax.ShapeDtypeStruct((B_pad, 1), jnp.float32),
        grid=(n_tiles,),
        in_specs=[
            pl.BlockSpec((TM, IN_FEATURES), lambda i: (i, 0)),       # x tile
            pl.BlockSpec((IN_FEATURES, HIDDEN), lambda i: (0, 0)),   # w1 (resident)
            pl.BlockSpec((1, HIDDEN), lambda i: (0, 0)),             # b1 (resident)
            pl.BlockSpec((1, HIDDEN), lambda i: (0, 0)),             # w2 row (resident)
            pl.BlockSpec((1, 1), lambda i: (0, 0),
                         memory_space=pltpu.MemorySpace.SMEM),       # b2 scalar
        ],
        out_specs=pl.BlockSpec((TM, 1), lambda i: (i, 0)),
        compiler_params=pltpu.CompilerParams(
            dimension_semantics=("parallel",)),
    )(x, w1, b1, w2, b2)

    return out[:B]


def init_params(key):
    """PyTorch-style default init (U[-1/sqrt(fan_in), 1/sqrt(fan_in)]),
    stored directly in kernel-friendly layout:
      w1: (in, out) = (50, 50)   (i.e. torch weight transposed, done once here)
      w2: (1, 50) row
    """
    k1, k2, k3, k4 = jax.random.split(key, 4)
    bound = 1.0 / jnp.sqrt(50.0)
    return {
        "w1": jax.random.uniform(k1, (IN_FEATURES, HIDDEN), jnp.float32, -bound, bound),
        "b1": jax.random.uniform(k2, (1, HIDDEN), jnp.float32, -bound, bound),
        "w2": jax.random.uniform(k3, (1, HIDDEN), jnp.float32, -bound, bound),
        "b2": jax.random.uniform(k4, (1, 1), jnp.float32, -bound, bound),
    }


def reference_forward(x, params):
    h = jnp.maximum(x @ params["w1"] + params["b1"], 0.0)
    return jnp.sum(h * params["w2"], axis=-1, keepdims=True) + params["b2"]


if __name__ == "__main__":
    key = jax.random.PRNGKey(0)
    kp, kx, ka = jax.random.split(key, 3)

    params = init_params(kp)

    # Small batch (divides evenly into the tile).
    B = 8
    x = jax.random.normal(kx, (B, IN_FEATURES), jnp.float32)
    actions = jax.random.normal(ka, (B, 4), jnp.float32)  # unused, as in PyTorch

    out = jax.block_until_ready(end_critic_forward(x, actions, params))
    ref = reference_forward(x, params)
    assert out.shape == (B, 1)
    assert jnp.allclose(out, ref, atol=1e-5, rtol=1e-5), "mismatch vs JAX reference (B=8)"

    # Ragged batch to exercise the zero-pad + slice path.
    B2 = 67
    x2 = jax.random.normal(jax.random.PRNGKey(1), (B2, IN_FEATURES), jnp.float32)
    out2 = jax.block_until_ready(end_critic_forward(x2, None, params))
    ref2 = reference_forward(x2, params)
    assert out2.shape == (B2, 1)
    assert jnp.allclose(out2, ref2, atol=1e-5, rtol=1e-5), "mismatch vs JAX reference (B=67)"

    print("KERNEL_OK")
</pallas_src>

<mosaic_0001>
module attributes {stable_mosaic.version = 11 : i64} {
  func.func @_end_critic_kernel(%arg0: i32, %arg1: memref<8x50xf32, #tpu.memory_space<vmem>>, %arg2: memref<50x50xf32, #tpu.memory_space<vmem>>, %arg3: memref<1x50xf32, #tpu.memory_space<vmem>>, %arg4: memref<1x50xf32, #tpu.memory_space<vmem>>, %arg5: memref<1x1xf32, #tpu.memory_space<smem>>, %arg6: memref<8x1xf32, #tpu.memory_space<vmem>>) attributes {dimension_semantics = [#tpu.dimension_semantics<parallel>], iteration_bounds = array<i64: 1>, scalar_prefetch = 0 : i64, scratch_operands = 0 : i64, tpu.core_type = #tpu.core_type<tc>, window_params = [{transform_indices = @transform_0, window_bounds = array<i64: 8, 50>}, {pipeline_mode = #tpu.pipeline_mode<synchronous>, transform_indices = @transform_1, window_bounds = array<i64: 50, 50>}, {pipeline_mode = #tpu.pipeline_mode<synchronous>, transform_indices = @transform_2, window_bounds = array<i64: 1, 50>}, {pipeline_mode = #tpu.pipeline_mode<synchronous>, transform_indices = @transform_3, window_bounds = array<i64: 1, 50>}, {transform_indices = @transform_4, window_bounds = array<i64: 1, 1>}, {transform_indices = @transform_5, window_bounds = array<i64: 8, 1>}]} {
    %c0 = arith.constant 0 : index
    %c0_0 = arith.constant 0 : index
    %0 = vector.load %arg1[%c0, %c0_0] : memref<8x50xf32, #tpu.memory_space<vmem>>, vector<8x50xf32>
    %c0_1 = arith.constant 0 : index
    %c0_2 = arith.constant 0 : index
    %1 = vector.load %arg2[%c0_1, %c0_2] : memref<50x50xf32, #tpu.memory_space<vmem>>, vector<50x50xf32>
    %cst = arith.constant dense<0.000000e+00> : vector<8x50xf32>
    %2 = tpu.matmul %0, %1, %cst {dimension_numbers = #tpu.dot_dimension_numbers<[1], [0], [0], [1], [0, 0, 1, 1], [], []>} : vector<8x50xf32>, vector<50x50xf32>, vector<8x50xf32> -> vector<8x50xf32>
    %c0_3 = arith.constant 0 : index
    %c0_4 = arith.constant 0 : index
    %3 = vector.load %arg3[%c0_3, %c0_4] : memref<1x50xf32, #tpu.memory_space<vmem>>, vector<1x50xf32>
    %4 = vector.broadcast %3 : vector<1x50xf32> to vector<8x50xf32>
    %5 = arith.addf %2, %4 : vector<8x50xf32>
    %cst_5 = arith.constant 0.000000e+00 : f32
    %6 = vector.broadcast %cst_5 : f32 to vector<8x50xf32>
    %7 = arith.maximumf %5, %6 : vector<8x50xf32>
    %c0_6 = arith.constant 0 : index
    %c0_7 = arith.constant 0 : index
    %8 = vector.load %arg4[%c0_6, %c0_7] : memref<1x50xf32, #tpu.memory_space<vmem>>, vector<1x50xf32>
    %9 = vector.broadcast %8 : vector<1x50xf32> to vector<8x50xf32>
    %10 = arith.mulf %7, %9 : vector<8x50xf32>
    %cst_8 = arith.constant dense<0.000000e+00> : vector<8xf32>
    %11 = vector.multi_reduction <add>, %10, %cst_8 [1] : vector<8x50xf32> to vector<8xf32>
    %12 = vector.shape_cast %11 : vector<8xf32> to vector<8x1xf32>
    %c0_9 = arith.constant 0 : index
    %c0_10 = arith.constant 0 : index
    %13 = memref.load %arg5[%c0_9, %c0_10] : memref<1x1xf32, #tpu.memory_space<smem>>
    %14 = vector.broadcast %13 : f32 to vector<8x1xf32>
    %15 = arith.addf %12, %14 : vector<8x1xf32>
    %c0_11 = arith.constant 0 : index
    %c0_12 = arith.constant 0 : index
    %16 = vector.load %arg6[%c0_11, %c0_12] : memref<8x1xf32, #tpu.memory_space<vmem>>, vector<8x1xf32>
    tpu.vector_store %arg6[%c0_11, %c0_12], %15 {strides = array<i32>} : memref<8x1xf32, #tpu.memory_space<vmem>>, vector<8x1xf32>,
    return
  }
  func.func @transform_0(%arg0: i32) -> (i32, i32) {
    %c0_i32 = arith.constant 0 : i32
    %c0_i32_0 = arith.constant 0 : i32
    return %arg0, %c0_i32 : i32, i32
  }
  func.func @transform_1(%arg0: i32) -> (i32, i32) {
    %c0_i32 = arith.constant 0 : i32
    %c0_i32_0 = arith.constant 0 : i32
    %c0_i32_1 = arith.constant 0 : i32
    return %c0_i32, %c0_i32_0 : i32, i32
  }
  func.func @transform_2(%arg0: i32) -> (i32, i32) {
    %c0_i32 = arith.constant 0 : i32
    %c0_i32_0 = arith.constant 0 : i32
    %c0_i32_1 = arith.constant 0 : i32
    return %c0_i32, %c0_i32_0 : i32, i32
  }
  func.func @transform_3(%arg0: i32) -> (i32, i32) {
    %c0_i32 = arith.constant 0 : i32
    %c0_i32_0 = arith.constant 0 : i32
    %c0_i32_1 = arith.constant 0 : i32
    return %c0_i32, %c0_i32_0 : i32, i32
  }
  func.func @transform_4(%arg0: i32) -> (i32, i32) {
    %c0_i32 = arith.constant 0 : i32
    %c0_i32_0 = arith.constant 0 : i32
    %c0_i32_1 = arith.constant 0 : i32
    return %c0_i32, %c0_i32_0 : i32, i32
  }
  func.func @transform_5(%arg0: i32) -> (i32, i32) {
    %c0_i32 = arith.constant 0 : i32
    %c0_i32_0 = arith.constant 0 : i32
    return %arg0, %c0_i32 : i32, i32
  }
}

</mosaic_0001>

<llo_original>
// kernel: tpu_custom_call.1
$region0: #{tpu_custom_call.1}
  #allocation0 [shape = 'u32[]', space=smem, size = 0x4, offset = 0x4, fixed_abs, tag = 'smem constant byte address 0x4 - core index']
  #allocation1 [shape = 'u32[72,128]{1,0:T(1,128)}', space=vmem, size = 0x9000, scoped, tag = 'internal scratch']
  #allocation2 [shape = 'f32[1,1]{1,0:T(1,128)S(6)}', space=smem, size = 0x200, scoped, tag = 'scoped memory for tpu_custom_call.1']
  %s0 = inlined_call_operand.hbm [shape: f32[8,50], index: 0, kind: input, shape index: {}]
  %s1 = inlined_call_operand.hbm [shape: f32[50,50], index: 1, kind: input, shape index: {}]
  %s2 = inlined_call_operand.vmem [shape: f32[1,50], index: 2, kind: input, shape index: {}]
  %s3 = inlined_call_operand.vmem [shape: f32[1,50], index: 3, kind: input, shape index: {}]
  %s4 = inlined_call_operand.<no memory space> [shape: f32[1,1], index: 4, kind: input, shape index: {}]
  %s5 = inlined_call_operand.vmem [shape: f32[8,1], index: 5, kind: output, shape index: {}]
  %s6 = sld [smem:[#allocation0]]
  $region38: #{tpu_custom_call.1} parent=0
    _
  %s8 = ssub.s32 1, %s6
  %s9 = scalar_select 0, %s8, %s6
  %10 = sst [smem:[#allocation2]] %s4
  $region1: #{tpu_custom_call.1} parent=0
    #allocation3 [shape = 'u8[4096]{0}', space=vmem, size = 0x1000, scoped, tag = 'input window, operand 0, single buffered']
    #allocation4 [shape = 's32[1]{0}', space=sflag, size = 0x4, scoped, tag = 'scoped memory for tpu_custom_call.1']
    #allocation5 [shape = 'u8[28672]{0}', space=vmem, size = 0x7000, scoped, tag = 'input window, operand 1, single buffered']
    #allocation6 [shape = 's32[1]{0}', space=sflag, size = 0x4, scoped, tag = 'scoped memory for tpu_custom_call.1']
    %11 = vsyncpa [#allocation4], 0
    %12 = vsyncpa [#allocation6], 0
    // Predicated region
    $region2: #{tpu_custom_call.1} parent=1 // pred_check
      _
    $region3: #{tpu_custom_call.1} parent=1 // pred_check_branch
      %14 = sbr.rel (0) target = $region5
    $region4: #{tpu_custom_call.1} parent=1 // pred_region
      %16 = vsyncadd [#allocation4], 0
      %s18 = sshll.u32 %s0, 4
      %s19 = int_to_ptr.hbm [resolvable:$true] %s18
      %s20 = sshll.u32 [#allocation3], 4
      %s21 = int_to_ptr.vmem [resolvable:$true] %s20
      %23 = dma.hbm_to_vmem [thread:$0]  %s19, 128, %s21, [#allocation4]
    $region5: #{tpu_custom_call.1} parent=1 // pred_fallthru
      _
    // Predicated region
    $region6: #{tpu_custom_call.1} parent=1 // pred_check
      _
    $region7: #{tpu_custom_call.1} parent=1 // pred_check_branch
      %25 = sbr.rel (0) target = $region9
    $region8: #{tpu_custom_call.1} parent=1 // pred_region
      %27 = vsyncadd [#allocation6], 0
      %s28 = sshll.u32 %s1, 4
      %s29 = int_to_ptr.hbm [resolvable:$true] %s28
      %s30 = sshll.u32 [#allocation5], 4
      %s31 = int_to_ptr.vmem [resolvable:$true] %s30
      %36 = dma.hbm_to_vmem [thread:$0]  %s29, 896, %s31, [#allocation6], 128, 128, 8
    $region9: #{tpu_custom_call.1} parent=1 // pred_fallthru
      _
    // Predicated region
    $region10: #{tpu_custom_call.1} parent=1 // pred_check
      _
    $region11: #{tpu_custom_call.1} parent=1 // pred_check_branch
      %38 = sbr.rel (0) target = $region13
    $region12: #{tpu_custom_call.1} parent=1 // pred_region
      _
    $region13: #{tpu_custom_call.1} parent=1 // pred_fallthru
      _
    // Predicated region
    $region14: #{tpu_custom_call.1} parent=1 // pred_check
      _
    $region15: #{tpu_custom_call.1} parent=1 // pred_check_branch
      %40 = sbr.rel (0) target = $region17
    $region16: #{tpu_custom_call.1} parent=1 // pred_region
      _
    $region17: #{tpu_custom_call.1} parent=1 // pred_fallthru
      _
    // Predicated region
    $region18: #{tpu_custom_call.1} parent=1 // pred_check
      _
    $region19: #{tpu_custom_call.1} parent=1 // pred_check_branch
      %42 = sbr.rel (0) target = $region21
    $region20: #{tpu_custom_call.1} parent=1 // pred_region
      _
    $region21: #{tpu_custom_call.1} parent=1 // pred_fallthru
      _
    // Predicated region
    $region22: #{tpu_custom_call.1} parent=1 // pred_check
      _
    $region23: #{tpu_custom_call.1} parent=1 // pred_check_branch
      %44 = sbr.rel (0) target = $region25
    $region24: #{tpu_custom_call.1} parent=1 // pred_region
      %46 = dma.done [#allocation4], 128
    $region25: #{tpu_custom_call.1} parent=1 // pred_fallthru
      _
    // Predicated region
    $region26: #{tpu_custom_call.1} parent=1 // pred_check
      _
    $region27: #{tpu_custom_call.1} parent=1 // pred_check_branch
      %48 = sbr.rel (0) target = $region29
    $region28: #{tpu_custom_call.1} parent=1 // pred_region
      %50 = dma.done [#allocation6], 896
    $region29: #{tpu_custom_call.1} parent=1 // pred_fallthru
      _
    %v51 = vld [vmem:[#allocation3] sm:$0xff]
    %v52 = vld [vmem:[#allocation5] sm:$0xff]
    %v53 = vld [vmem:[#allocation5 + $0x8] sm:$0xff]
    %v54 = vld [vmem:[#allocation5 + $0x10] sm:$0xff]
    %v55 = vld [vmem:[#allocation5 + $0x18] sm:$0xff]
    %v56 = vld [vmem:[#allocation5 + $0x20] sm:$0xff]
    %v57 = vld [vmem:[#allocation5 + $0x28] sm:$0xff]
    %v58 = vld [vmem:[#allocation5 + $0x30] sm:$0x3]
    %v59 = vld [vmem:[%s2] sm:$0x1]
    %v61 = vperm.slane %v59, 0
    %vm63 = vcmask 408576
    %v65 = vsel %vm63, %v51, 0
    %vm67 = vcmask 1041408
    %v69 = vsel %vm67, %v58, 0
    %71 = vmatpush.msra.mxu0 0.0
    %72 = vmatpush.msra.mxu0 0.0
    %73 = vmatpush.msra.mxu0 0.0
    %74 = vmatpush.msra.mxu0 0.0
    %75 = vmatpush.msra.mxu0 0.0
    %76 = vmatpush.msra.mxu0 0.0
    %77 = vmatpush.msra.mxu0 0.0
    %78 = vmatpush.msra.mxu0 0.0
    %79 = vmatpush.msra.mxu0 0.0
    %80 = vmatpush.msra.mxu0 %v69
    %81 = vmatpush.msra.mxu0 %v57
    %82 = vmatpush.msra.mxu0 %v56
    %83 = vmatpush.msra.mxu0 %v55
    %84 = vmatpush.msra.mxu0 %v54
    %85 = vmatpush.msra.mxu0 %v53
    %86 = vmatpush.msra.mxu0 %v52
    %87 = vmatmul.f32.gmra.mxu0 %v65
    %v88 = vpop.f32.mrf.mxu0
    %v89 = vadd.f32 %v61, %v88
    %90 = vdwg.mxu0
    %v91 = vmax.f32 %v89, 0.0
    %v92 = vld [vmem:[%s3] sm:$0x1]
    %v94 = vperm.slane %v92, 0
    %v96 = vmul.f32 %v91, %v94
    %v97 = vsel %vm63, %v96, 0.0
    %98 = vadd.xlane.f32.xlu0 %v97
    %v99 = vpop.xlane.xlu0 %98
    %s100 = sld [smem:[#allocation2]]
    %v101 = vstv %s100
    %v102 = vadd.f32 %v99, %v101
    %vm103 = vcmask 7168
    %104 = vst.msk [vmem:[%s5] sm:$0xff] %vm103, %v102
    // Predicated region
    $region30: #{tpu_custom_call.1} parent=1 // pred_check
      _
    $region31: #{tpu_custom_call.1} parent=1 // pred_check_branch
      %106 = sbr.rel (0) target = $region33
    $region32: #{tpu_custom_call.1} parent=1 // pred_region
      _
    $region33: #{tpu_custom_call.1} parent=1 // pred_fallthru
      _
    // Predicated region
    $region34: #{tpu_custom_call.1} parent=1 // pred_check
      _
    $region35: #{tpu_custom_call.1} parent=1 // pred_check_branch
      %108 = sbr.rel (0) target = $region37
    $region36: #{tpu_custom_call.1} parent=1 // pred_region
      _
    $region37: #{tpu_custom_call.1} parent=1 // pred_fallthru
      _
    %109 = vsyncpa [#allocation4], 1
    %110 = vsyncpa [#allocation6], 1

</llo_original>
